<compile_context>
chip_gen: v6e
topology: v6e:2x2x1
jax: 0.10.0
libtpu: 0.0.40
codegen_flags: <defaults>
</compile_context>

<pallas_src>
import jax
import jax.numpy as jnp
from jax.experimental import pallas as pl
from jax.experimental.pallas import tpu as pltpu

LANE = 128
SUBLANE = 8


def _round_up(n, m):
    return ((n + m - 1) // m) * m


def policy_net_kernel(x_ref, w1_ref, w2_ref, out_ref):
    s = w1_ref.shape[0] - 1      # state_dim (last row of w1_big is b1)
    hp = w2_ref.shape[0] - 1     # lane-padded hidden dim (last row of w2_big is b2)

    x = x_ref[...]               # (tb, S)
    w1 = w1_ref[...]             # (S+1, H_pad)
    w2 = w2_ref[...]             # (H_pad+1, A)

    # fc1 + bias (broadcast-add of the packed bias row) + relu.
    h = jnp.dot(x, w1[:s, :], preferred_element_type=jnp.float32) + w1[s:s + 1, :]
    h = jnp.maximum(h, 0.0)      # (tb, H_pad); pad columns are exactly 0

    # fc2 + bias -> logits over the real actions only.
    logits = (jnp.dot(h, w2[:hp, :], preferred_element_type=jnp.float32)
              + w2[hp:hp + 1, :])                       # (tb, A)

    # Numerically stable softmax over the action (lane) axis, exact divide so
    # rows sum to 1 to f32 precision.
    m = jnp.max(logits, axis=-1, keepdims=True)
    e = jnp.exp(logits - m)
    denom = jnp.sum(e, axis=-1, keepdims=True)
    out_ref[...] = (e / denom).astype(out_ref.dtype)


def pack_params(w1, b1, w2, b2):
    """Pack biases as the last row of each weight matrix; lane-pad the hidden dim.

    w1: (S, H), b1: (1, H) or (H,), w2: (H, A), b2: (1, A) or (A,)
    Returns W1_big (S+1, H_pad) and W2_big (H_pad+1, A), H_pad = ceil(H/128)*128.
    Pad columns of W1_big / pad rows of W2_big are zero, so the padded hidden
    units are exactly 0 after ReLU and contribute nothing to the logits.
    """
    S, H = w1.shape
    A = w2.shape[1]
    H_pad = _round_up(H, LANE)

    w1_big = jnp.zeros((S + 1, H_pad), jnp.float32)
    w1_big = w1_big.at[:S, :H].set(w1)
    w1_big = w1_big.at[S, :H].set(jnp.reshape(b1, (-1,)))

    w2_big = jnp.zeros((H_pad + 1, A), jnp.float32)
    w2_big = w2_big.at[:H, :].set(w2)
    w2_big = w2_big.at[H_pad, :].set(jnp.reshape(b2, (-1,)))
    return w1_big, w2_big


def policy_net_forward(x, w1_big, w2_big, *, block_b=4096):
    """x: (B, S) float32.  Returns softmax probabilities (B, action_dim)."""
    B, S = x.shape
    S1, H_pad = w1_big.shape
    assert S1 == S + 1
    H_pad1, A = w2_big.shape
    assert H_pad1 == H_pad + 1

    # Batch tiling: big tiles (per-step overhead ~600 cycles dominates at these
    # sizes); pad the batch only when it is not already a tile multiple.
    B_pad = _round_up(B, SUBLANE)
    tb = min(_round_up(block_b, SUBLANE), B_pad)
    B_pad = _round_up(B_pad, tb)
    if B_pad != B:
        x = jnp.pad(x, ((0, B_pad - B), (0, 0)))
    grid = (B_pad // tb,)

    flops = 2 * B_pad * (S * H_pad + H_pad * A)
    bytes_accessed = 4 * (B_pad * S + w1_big.size + w2_big.size + B_pad * A)

    out = pl.pallas_call(
        policy_net_kernel,
        out_shape=jax.ShapeDtypeStruct((B_pad, A), jnp.float32),
        grid=grid,
        in_specs=[
            pl.BlockSpec((tb, S), lambda i: (i, 0)),          # batch-tiled input
            pl.BlockSpec((S1, H_pad), lambda i: (0, 0)),      # resident weights
            pl.BlockSpec((H_pad1, A), lambda i: (0, 0)),      # resident weights
        ],
        out_specs=pl.BlockSpec((tb, A), lambda i: (i, 0)),    # narrow output
        compiler_params=pltpu.CompilerParams(
            dimension_semantics=("parallel",)),
        cost_estimate=pl.CostEstimate(
            flops=flops,
            transcendentals=B_pad * A,
            bytes_accessed=bytes_accessed),
    )(x, w1_big, w2_big)

    return out if B_pad == B else out[:B]


def init_params(key, state_dim, hidden_dim, action_dim):
    """Deterministic init mimicking torch.nn.Linear (uniform +-1/sqrt(fan_in))."""
    k1, k2, k3, k4 = jax.random.split(key, 4)
    bound1 = 1.0 / jnp.sqrt(state_dim)
    bound2 = 1.0 / jnp.sqrt(hidden_dim)
    # Stored pre-transposed: (in_features, out_features).
    w1 = jax.random.uniform(k1, (state_dim, hidden_dim), jnp.float32, -bound1, bound1)
    b1 = jax.random.uniform(k2, (1, hidden_dim), jnp.float32, -bound1, bound1)
    w2 = jax.random.uniform(k3, (hidden_dim, action_dim), jnp.float32, -bound2, bound2)
    b2 = jax.random.uniform(k4, (1, action_dim), jnp.float32, -bound2, bound2)
    return w1, b1, w2, b2


if __name__ == "__main__":
    # Small shapes consistent with the module: state_dim=4, hidden_dim=32, action_dim=6.
    batch, state_dim, hidden_dim, action_dim = 2, 4, 32, 6

    key = jax.random.PRNGKey(0)
    kx, kp = jax.random.split(key)
    x = jax.random.normal(kx, (batch, state_dim), jnp.float32)
    w1, b1, w2, b2 = init_params(kp, state_dim, hidden_dim, action_dim)

    # One-time parameter packing (fold biases as extra rows, lane-pad hidden dim).
    w1_big, w2_big = pack_params(w1, b1, w2, b2)

    out = policy_net_forward(x, w1_big, w2_big)
    out = jax.block_until_ready(out)

    # Reference check in plain JAX (same math as the PyTorch module).
    h_ref = jnp.maximum(
        jnp.dot(x, w1, precision=jax.lax.Precision.HIGHEST) + b1, 0.0)
    logits_ref = jnp.dot(h_ref, w2, precision=jax.lax.Precision.HIGHEST) + b2
    ref = jax.nn.softmax(logits_ref, axis=1)

    assert out.shape == (batch, action_dim)
    assert jnp.allclose(out, ref, atol=1e-3, rtol=1e-3)
    # Exact divide in the kernel -> rows sum to 1 to f32 precision.
    assert jnp.allclose(jnp.sum(out, axis=1), 1.0, atol=1e-3)

    print("KERNEL_OK")
</pallas_src>

<mosaic_0001>
module attributes {stable_mosaic.version = 11 : i64} {
  func.func @policy_net_kernel(%arg0: i32, %arg1: memref<8x4xf32, #tpu.memory_space<vmem>>, %arg2: memref<5x128xf32, #tpu.memory_space<vmem>>, %arg3: memref<129x6xf32, #tpu.memory_space<vmem>>, %arg4: memref<8x6xf32, #tpu.memory_space<vmem>>) attributes {dimension_semantics = [#tpu.dimension_semantics<parallel>], iteration_bounds = array<i64: 1>, scalar_prefetch = 0 : i64, scratch_operands = 0 : i64, tpu.core_type = #tpu.core_type<tc>, window_params = [{transform_indices = @transform_0, window_bounds = array<i64: 8, 4>}, {pipeline_mode = #tpu.pipeline_mode<synchronous>, transform_indices = @transform_1, window_bounds = array<i64: 5, 128>}, {pipeline_mode = #tpu.pipeline_mode<synchronous>, transform_indices = @transform_2, window_bounds = array<i64: 129, 6>}, {transform_indices = @transform_3, window_bounds = array<i64: 8, 6>}]} {
    %c0 = arith.constant 0 : index
    %c0_0 = arith.constant 0 : index
    %0 = vector.load %arg1[%c0, %c0_0] : memref<8x4xf32, #tpu.memory_space<vmem>>, vector<8x4xf32>
    %c0_1 = arith.constant 0 : index
    %c0_2 = arith.constant 0 : index
    %1 = vector.load %arg2[%c0_1, %c0_2] : memref<5x128xf32, #tpu.memory_space<vmem>>, vector<5x128xf32>
    %c0_3 = arith.constant 0 : index
    %c0_4 = arith.constant 0 : index
    %2 = vector.load %arg3[%c0_3, %c0_4] : memref<129x6xf32, #tpu.memory_space<vmem>>, vector<129x6xf32>
    %3 = vector.extract_strided_slice %1 {offsets = [0, 0], sizes = [4, 128], strides = [1, 1]} : vector<5x128xf32> to vector<4x128xf32>
    %cst = arith.constant dense<0.000000e+00> : vector<8x128xf32>
    %4 = tpu.matmul %0, %3, %cst {dimension_numbers = #tpu.dot_dimension_numbers<[1], [0], [0], [1], [0, 0, 1, 1], [], []>} : vector<8x4xf32>, vector<4x128xf32>, vector<8x128xf32> -> vector<8x128xf32>
    %5 = vector.extract_strided_slice %1 {offsets = [4, 0], sizes = [1, 128], strides = [1, 1]} : vector<5x128xf32> to vector<1x128xf32>
    %6 = vector.broadcast %5 : vector<1x128xf32> to vector<8x128xf32>
    %7 = arith.addf %4, %6 : vector<8x128xf32>
    %cst_5 = arith.constant 0.000000e+00 : f32
    %8 = vector.broadcast %cst_5 : f32 to vector<8x128xf32>
    %9 = arith.maximumf %7, %8 : vector<8x128xf32>
    %10 = vector.extract_strided_slice %2 {offsets = [0, 0], sizes = [128, 6], strides = [1, 1]} : vector<129x6xf32> to vector<128x6xf32>
    %cst_6 = arith.constant dense<0.000000e+00> : vector<8x6xf32>
    %11 = tpu.matmul %9, %10, %cst_6 {dimension_numbers = #tpu.dot_dimension_numbers<[1], [0], [0], [1], [0, 0, 1, 1], [], []>} : vector<8x128xf32>, vector<128x6xf32>, vector<8x6xf32> -> vector<8x6xf32>
    %12 = vector.extract_strided_slice %2 {offsets = [128, 0], sizes = [1, 6], strides = [1, 1]} : vector<129x6xf32> to vector<1x6xf32>
    %13 = vector.broadcast %12 : vector<1x6xf32> to vector<8x6xf32>
    %14 = arith.addf %11, %13 : vector<8x6xf32>
    %cst_7 = arith.constant dense<0xFF800000> : vector<8xf32>
    %15 = vector.multi_reduction <maximumf>, %14, %cst_7 [1] : vector<8x6xf32> to vector<8xf32>
    %16 = vector.shape_cast %15 : vector<8xf32> to vector<8x1xf32>
    %17 = vector.broadcast %16 : vector<8x1xf32> to vector<8x6xf32>
    %18 = arith.subf %14, %17 : vector<8x6xf32>
    %19 = math.exp %18 : vector<8x6xf32>
    %cst_8 = arith.constant dense<0.000000e+00> : vector<8xf32>
    %20 = vector.multi_reduction <add>, %19, %cst_8 [1] : vector<8x6xf32> to vector<8xf32>
    %21 = vector.shape_cast %20 : vector<8xf32> to vector<8x1xf32>
    %22 = vector.broadcast %21 : vector<8x1xf32> to vector<8x6xf32>
    %23 = arith.divf %19, %22 : vector<8x6xf32>
    %c0_9 = arith.constant 0 : index
    %c0_10 = arith.constant 0 : index
    %24 = vector.load %arg4[%c0_9, %c0_10] : memref<8x6xf32, #tpu.memory_space<vmem>>, vector<8x6xf32>
    tpu.vector_store %arg4[%c0_9, %c0_10], %23 {strides = array<i32>} : memref<8x6xf32, #tpu.memory_space<vmem>>, vector<8x6xf32>,
    return
  }
  func.func @transform_0(%arg0: i32) -> (i32, i32) {
    %c0_i32 = arith.constant 0 : i32
    %c0_i32_0 = arith.constant 0 : i32
    return %arg0, %c0_i32 : i32, i32
  }
  func.func @transform_1(%arg0: i32) -> (i32, i32) {
    %c0_i32 = arith.constant 0 : i32
    %c0_i32_0 = arith.constant 0 : i32
    %c0_i32_1 = arith.constant 0 : i32
    return %c0_i32, %c0_i32_0 : i32, i32
  }
  func.func @transform_2(%arg0: i32) -> (i32, i32) {
    %c0_i32 = arith.constant 0 : i32
    %c0_i32_0 = arith.constant 0 : i32
    %c0_i32_1 = arith.constant 0 : i32
    return %c0_i32, %c0_i32_0 : i32, i32
  }
  func.func @transform_3(%arg0: i32) -> (i32, i32) {
    %c0_i32 = arith.constant 0 : i32
    %c0_i32_0 = arith.constant 0 : i32
    return %arg0, %c0_i32 : i32, i32
  }
}

</mosaic_0001>

<llo_original>
// kernel: tpu_custom_call.1
$region0: #{tpu_custom_call.1}
  #allocation0 [shape = 'u32[]', space=smem, size = 0x4, offset = 0x4, fixed_abs, tag = 'smem constant byte address 0x4 - core index']
  #allocation1 [shape = 'u32[144,128]{1,0:T(1,128)}', space=vmem, size = 0x12000, scoped, tag = 'internal scratch']
  %s0 = inlined_call_operand.vmem [shape: f32[8,4], index: 0, kind: input, shape index: {}]
  %s1 = inlined_call_operand.vmem [shape: f32[5,128], index: 1, kind: input, shape index: {}]
  %s2 = inlined_call_operand.vmem [shape: f32[129,6], index: 2, kind: input, shape index: {}]
  %s3 = inlined_call_operand.hbm [shape: f32[8,6], index: 3, kind: output, shape index: {}]
  %s4 = sld [smem:[#allocation0]]
  $region22: #{tpu_custom_call.1} parent=0
    _
  %s6 = ssub.s32 1, %s4
  %s7 = scalar_select 0, %s6, %s4
  $region1: #{tpu_custom_call.1} parent=0
    #allocation2 [shape = 'u8[4096]{0}', space=vmem, size = 0x1000, scoped, tag = 'output window, operand 0, single buffered']
    #allocation3 [shape = 's32[1]{0}', space=sflag, size = 0x4, scoped, tag = 'scoped memory for tpu_custom_call.1']
    %8 = vsyncpa [#allocation3], 0
    // Predicated region
    $region2: #{tpu_custom_call.1} parent=1 // pred_check
      _
    $region3: #{tpu_custom_call.1} parent=1 // pred_check_branch
      %10 = sbr.rel (0) target = $region5
    $region4: #{tpu_custom_call.1} parent=1 // pred_region
      _
    $region5: #{tpu_custom_call.1} parent=1 // pred_fallthru
      _
    // Predicated region
    $region6: #{tpu_custom_call.1} parent=1 // pred_check
      _
    $region7: #{tpu_custom_call.1} parent=1 // pred_check_branch
      %12 = sbr.rel (0) target = $region9
    $region8: #{tpu_custom_call.1} parent=1 // pred_region
      _
    $region9: #{tpu_custom_call.1} parent=1 // pred_fallthru
      _
    // Predicated region
    $region10: #{tpu_custom_call.1} parent=1 // pred_check
      _
    $region11: #{tpu_custom_call.1} parent=1 // pred_check_branch
      %14 = sbr.rel (0) target = $region13
    $region12: #{tpu_custom_call.1} parent=1 // pred_region
      _
    $region13: #{tpu_custom_call.1} parent=1 // pred_fallthru
      _
    %v15 = vld [vmem:[%s0] sm:$0xff]
    %v16 = vld [vmem:[%s1] sm:$0x1f]
    %v17 = vld [vmem:[%s2] sm:$0xff]
    %v18 = vld [vmem:[%s2 + $0x8] sm:$0xff]
    %v19 = vld [vmem:[%s2 + $0x10] sm:$0xff]
    %v20 = vld [vmem:[%s2 + $0x18] sm:$0xff]
    %v21 = vld [vmem:[%s2 + $0x20] sm:$0xff]
    %v22 = vld [vmem:[%s2 + $0x28] sm:$0xff]
    %v23 = vld [vmem:[%s2 + $0x30] sm:$0xff]
    %v24 = vld [vmem:[%s2 + $0x38] sm:$0xff]
    %v25 = vld [vmem:[%s2 + $0x40] sm:$0xff]
    %v26 = vld [vmem:[%s2 + $0x48] sm:$0xff]
    %v27 = vld [vmem:[%s2 + $0x50] sm:$0xff]
    %v28 = vld [vmem:[%s2 + $0x58] sm:$0xff]
    %v29 = vld [vmem:[%s2 + $0x60] sm:$0xff]
    %v30 = vld [vmem:[%s2 + $0x68] sm:$0xff]
    %v31 = vld [vmem:[%s2 + $0x70] sm:$0xff]
    %v32 = vld [vmem:[%s2 + $0x78] sm:$0xff]
    %v33 = vld [vmem:[%s2 + $0x80] sm:$0x1]
    %v34 = vlaneseq
    %v35 = vshrl.u32 %v34, 7
    %v36 = vsub.s32 4, %v35
    %v37 = vrot.slane %v16, %v36
    %vm38 = vcmask 31744
    %v40 = vsel %vm38, %v15, 0
    %vm42 = vcmask 1043456
    %v44 = vsel %vm42, %v16, 0
    %46 = vmatprep.subr.mxu0 0.0
    %47 = vmatpush1.msra.mxu0 0.0
    %48 = vmatprep.subr.mxu0 0.0
    %49 = vmatpush1.msra.mxu0 0.0
    %50 = vmatprep.subr.mxu0 0.0
    %51 = vmatpush1.msra.mxu0 0.0
    %52 = vmatprep.subr.mxu0 0.0
    %53 = vmatpush1.msra.mxu0 0.0
    %54 = vmatprep.subr.mxu0 0.0
    %55 = vmatpush1.msra.mxu0 0.0
    %56 = vmatprep.subr.mxu0 0.0
    %57 = vmatpush1.msra.mxu0 0.0
    %58 = vmatprep.subr.mxu0 0.0
    %59 = vmatpush1.msra.mxu0 0.0
    %60 = vmatprep.subr.mxu0 0.0
    %61 = vmatpush1.msra.mxu0 0.0
    %62 = vmatprep.subr.mxu0 0.0
    %63 = vmatpush1.msra.mxu0 0.0
    %64 = vmatprep.subr.mxu0 0.0
    %65 = vmatpush1.msra.mxu0 0.0
    %66 = vmatprep.subr.mxu0 0.0
    %67 = vmatpush1.msra.mxu0 0.0
    %68 = vmatprep.subr.mxu0 0.0
    %69 = vmatpush1.msra.mxu0 0.0
    %70 = vmatprep.subr.mxu0 0.0
    %71 = vmatpush1.msra.mxu0 0.0
    %72 = vmatprep.subr.mxu0 0.0
    %73 = vmatpush1.msra.mxu0 0.0
    %74 = vmatprep.subr.mxu0 0.0
    %75 = vmatpush1.msra.mxu0 0.0
    %76 = vmatprep.subr.mxu0 0.0
    %77 = vmatpush1.msra.mxu0 %v44
    %78 = vmatprep.subr.mxu0 0.0
    %79 = vmatpush2.msra.mxu0 0.0
    %80 = vmatprep.subr.mxu0 0.0
    %81 = vmatpush2.msra.mxu0 0.0
    %82 = vmatprep.subr.mxu0 0.0
    %83 = vmatpush2.msra.mxu0 0.0
    %84 = vmatprep.subr.mxu0 0.0
    %85 = vmatpush2.msra.mxu0 0.0
    %86 = vmatprep.subr.mxu0 0.0
    %87 = vmatpush2.msra.mxu0 0.0
    %88 = vmatprep.subr.mxu0 0.0
    %89 = vmatpush2.msra.mxu0 0.0
    %90 = vmatprep.subr.mxu0 0.0
    %91 = vmatpush2.msra.mxu0 0.0
    %92 = vmatprep.subr.mxu0 0.0
    %93 = vmatpush2.msra.mxu0 0.0
    %94 = vmatprep.subr.mxu0 0.0
    %95 = vmatpush2.msra.mxu0 0.0
    %96 = vmatprep.subr.mxu0 0.0
    %97 = vmatpush2.msra.mxu0 0.0
    %98 = vmatprep.subr.mxu0 0.0
    %99 = vmatpush2.msra.mxu0 0.0
    %100 = vmatprep.subr.mxu0 0.0
    %101 = vmatpush2.msra.mxu0 0.0
    %102 = vmatprep.subr.mxu0 0.0
    %103 = vmatpush2.msra.mxu0 0.0
    %104 = vmatprep.subr.mxu0 0.0
    %105 = vmatpush2.msra.mxu0 0.0
    %106 = vmatprep.subr.mxu0 0.0
    %107 = vmatpush2.msra.mxu0 0.0
    %108 = vmatprep.subr.mxu0 0.0
    %109 = vmatpush2.msra.mxu0 0.0
    %110 = vmatprep.mubr.f32.mxu0 0.0
    %111 = vmatmul.mubr.f32.gmra.mxu0 %v40
    %v112 = vpop.f32.mrf.mxu0
    %v113 = vadd.f32 %v37, %v112
    %v114 = vpop.f32.mrf.mxu0
    %115 = vdwg.mxu0
    %v116 = vmax.f32 %v113, 0.0
    %v117 = vlaneseq
    %v118 = vshrl.u32 %v117, 7
    %v119 = vsub.s32 0, %v118
    %v120 = vrot.slane %v33, %v119
    %121 = vmatprep.subr.mxu0 0.0
    %122 = vmatpush1.msra.mxu0 %v32
    %123 = vmatprep.subr.mxu0 0.0
    %124 = vmatpush1.msra.mxu0 %v31
    %125 = vmatprep.subr.mxu0 0.0
    %126 = vmatpush1.msra.mxu0 %v30
    %127 = vmatprep.subr.mxu0 0.0
    %128 = vmatpush1.msra.mxu0 %v29
    %129 = vmatprep.subr.mxu0 0.0
    %130 = vmatpush1.msra.mxu0 %v28
    %131 = vmatprep.subr.mxu0 0.0
    %132 = vmatpush1.msra.mxu0 %v27
    %133 = vmatprep.subr.mxu0 0.0
    %134 = vmatpush1.msra.mxu0 %v26
    %135 = vmatprep.subr.mxu0 0.0
    %136 = vmatpush1.msra.mxu0 %v25
    %137 = vmatprep.subr.mxu0 0.0
    %138 = vmatpush1.msra.mxu0 %v24
    %139 = vmatprep.subr.mxu0 0.0
    %140 = vmatpush1.msra.mxu0 %v23
    %141 = vmatprep.subr.mxu0 0.0
    %142 = vmatpush1.msra.mxu0 %v22
    %143 = vmatprep.subr.mxu0 0.0
    %144 = vmatpush1.msra.mxu0 %v21
    %145 = vmatprep.subr.mxu0 0.0
    %146 = vmatpush1.msra.mxu0 %v20
    %147 = vmatprep.subr.mxu0 0.0
    %148 = vmatpush1.msra.mxu0 %v19
    %149 = vmatprep.subr.mxu0 0.0
    %150 = vmatpush1.msra.mxu0 %v18
    %151 = vmatprep.subr.mxu0 0.0
    %152 = vmatpush1.msra.mxu0 %v17
    %153 = vmatprep.subr.mxu0 0.0
    %154 = vmatpush2.msra.mxu0 0.0
    %155 = vmatprep.subr.mxu0 0.0
    %156 = vmatpush2.msra.mxu0 0.0
    %157 = vmatprep.subr.mxu0 0.0
    %158 = vmatpush2.msra.mxu0 0.0
    %159 = vmatprep.subr.mxu0 0.0
    %160 = vmatpush2.msra.mxu0 0.0
    %161 = vmatprep.subr.mxu0 0.0
    %162 = vmatpush2.msra.mxu0 0.0
    %163 = vmatprep.subr.mxu0 0.0
    %164 = vmatpush2.msra.mxu0 0.0
    %165 = vmatprep.subr.mxu0 0.0
    %166 = vmatpush2.msra.mxu0 0.0
    %167 = vmatprep.subr.mxu0 0.0
    %168 = vmatpush2.msra.mxu0 0.0
    %169 = vmatprep.subr.mxu0 0.0
    %170 = vmatpush2.msra.mxu0 0.0
    %171 = vmatprep.subr.mxu0 0.0
    %172 = vmatpush2.msra.mxu0 0.0
    %173 = vmatprep.subr.mxu0 0.0
    %174 = vmatpush2.msra.mxu0 0.0
    %175 = vmatprep.subr.mxu0 0.0
    %176 = vmatpush2.msra.mxu0 0.0
    %177 = vmatprep.subr.mxu0 0.0
    %178 = vmatpush2.msra.mxu0 0.0
    %179 = vmatprep.subr.mxu0 0.0
    %180 = vmatpush2.msra.mxu0 0.0
    %181 = vmatprep.subr.mxu0 0.0
    %182 = vmatpush2.msra.mxu0 0.0
    %183 = vmatprep.subr.mxu0 0.0
    %184 = vmatpush2.msra.mxu0 0.0
    %185 = vmatprep.mubr.f32.mxu0 0.0
    %186 = vmatmul.mubr.f32.gmra.mxu0 %v116
    %v187 = vpop.f32.mrf.mxu0
    %v188 = vadd.f32 %v120, %v187
    %v189 = vpop.f32.mrf.mxu0
    %190 = vdwg.mxu0
    %vm191 = vcmask 48128
    %v192 = vsel %vm191, %v188, -inf
    %193 = vmax.xlane.f32.xlu0 %v192
    %v194 = vpop.xlane.xlu0 %193
    %v195 = vsub.f32 %v188, %v194
    %v196 = vmul.f32 %v195, 1.442695
    %v197 = vpow.pop %v196
    %v198 = vsel %vm191, %v197, 0.0
    %199 = vadd.xlane.f32.xlu0 %v198
    %v200 = vpop.xlane.xlu0 %199
    %v201 = vrcp.pop %v200
    %v202 = vmul.f32 %v197, %v201
    %203 = vst.msk [vmem:[#allocation2] sm:$0xff] %vm191, %v202
    // Predicated region
    $region14: #{tpu_custom_call.1} parent=1 // pred_check
      _
    $region15: #{tpu_custom_call.1} parent=1 // pred_check_branch
      %205 = sbr.rel (0) target = $region17
    $region16: #{tpu_custom_call.1} parent=1 // pred_region
      %s207 = ssub.s32 128, 128
      %208 = vsyncadd [#allocation3], %s207
      %s210 = sshll.u32 [#allocation2], 4
      %s211 = int_to_ptr.vmem [resolvable:$true] %s210
      %213 = dma.vmem_to_hbm [thread:$0]  %s211, 128, %s3, [#allocation3]
    $region17: #{tpu_custom_call.1} parent=1 // pred_fallthru
      _
    // Predicated region
    $region18: #{tpu_custom_call.1} parent=1 // pred_check
      _
    $region19: #{tpu_custom_call.1} parent=1 // pred_check_branch
      %215 = sbr.rel (0) target = $region21
    $region20: #{tpu_custom_call.1} parent=1 // pred_region
      %216 = dma.done [#allocation3], 128
    $region21: #{tpu_custom_call.1} parent=1 // pred_fallthru
      _
    %217 = vsyncpa [#allocation3], 1

</llo_original>
